<compile_context>
chip_gen: v5e
topology: v5e:2x2
jax: 0.10.0
libtpu: 0.0.40
codegen_flags: <defaults>
</compile_context>

<pallas_src>
import jax
import jax.numpy as jnp
from jax.experimental import pallas as pl
from jax.experimental.pallas import tpu as pltpu


def _round_up(n, m):
    return ((n + m - 1) // m) * m


def _linear_leaky_kernel(w_ref, b_ref, x_ref, o_ref):
    # w_ref: SMEM (IN*OUT,) f32, row-major over (IN, OUT)  [scalar prefetch]
    # b_ref: SMEM (OUT,)    f32                             [scalar prefetch]
    # x_ref: VMEM (TB, IN)  f32
    # o_ref: VMEM (TB, OUT) f32
    in_k = x_ref.shape[1]          # static == 2, fully unrolled
    out_n = o_ref.shape[1]         # static == 4, fully unrolled
    x = x_ref[...]                 # (TB, IN)

    # Scalar-splat MAC per output column: y[:, o] = sum_k x[:, k] * w[k, o] + b[o]
    # Keeps all work on the 4-wide VALU slot (no XLU lane broadcast, no MXU).
    for o in range(out_n):
        acc = x[:, 0:1] * w_ref[o]
        for k in range(1, in_k):
            acc = acc + x[:, k:k + 1] * w_ref[k * out_n + o]
        y = acc + b_ref[o]
        # where(y > 0, y, 0.25 * y) -- pure VPU select
        o_ref[:, o:o + 1] = jnp.where(
            y > 0, y, y * jnp.float32(0.25)).astype(o_ref.dtype)


def linear_where(x, w, b, *, tb_max=2048):
    """x: (B, IN) f32, w: (IN, OUT) f32, b: (OUT,) f32 -> (B, OUT) f32."""
    x = x.astype(jnp.float32)
    B, IN = x.shape
    OUT = w.shape[1]

    # Tiny parameters go to SMEM via scalar prefetch.
    w_flat = w.astype(jnp.float32).reshape(IN * OUT)
    b_flat = b.astype(jnp.float32).reshape(OUT)

    if B <= 16:
        # Tiny-batch fast path (covers the literal B=1 module): one untiled
        # block (block dims equal full array dims), single grid step.
        tb = B
    else:
        # Rows per tile: multiple of 8 (sublane), capped at tb_max, and chosen
        # so there are >=2 grid steps (v7x dual-TC sharding of the row axis).
        tb = min(tb_max, _round_up(pl.cdiv(B, 2), 8))
    grid = (pl.cdiv(B, tb),)

    return pl.pallas_call(
        _linear_leaky_kernel,
        out_shape=jax.ShapeDtypeStruct((B, OUT), jnp.float32),
        grid_spec=pltpu.PrefetchScalarGridSpec(
            num_scalar_prefetch=2,                       # w_flat, b_flat -> SMEM
            grid=grid,
            in_specs=[
                pl.BlockSpec((tb, IN), lambda i, w_s, b_s: (i, 0)),
            ],
            out_specs=pl.BlockSpec((tb, OUT), lambda i, w_s, b_s: (i, 0)),
        ),
        compiler_params=pltpu.CompilerParams(
            dimension_semantics=("parallel",)),
    )(w_flat, b_flat, x)


if __name__ == "__main__":
    key = jax.random.PRNGKey(0)
    kx, kw, kb = jax.random.split(key, 3)

    # Shapes from the PyTorch module: x1 = randn(1, 2); Linear(2, 4).
    B, IN, OUT = 1, 2, 4
    x1 = jax.random.normal(kx, (B, IN), dtype=jnp.float32)

    # Deterministic parameter init mimicking nn.Linear's U(-1/sqrt(IN), 1/sqrt(IN)).
    # (PyTorch stores weight as (OUT, IN); here we hold the transposed (IN, OUT).)
    bound = 1.0 / (IN ** 0.5)
    w = jax.random.uniform(kw, (IN, OUT), minval=-bound, maxval=bound,
                           dtype=jnp.float32)
    b = jax.random.uniform(kb, (OUT,), minval=-bound, maxval=bound,
                           dtype=jnp.float32)

    out = linear_where(x1, w, b)
    jax.block_until_ready(out)

    # Pure-JAX reference check of the forward semantics.
    y_ref = x1 @ w + b
    expected = jnp.where(y_ref > 0, y_ref, y_ref * 0.25)
    assert out.shape == (B, OUT)
    assert jnp.allclose(out, expected, atol=1e-5, rtol=1e-5)

    # Larger, ragged batch to exercise the multi-step (parallel) row grid.
    xb = jax.random.normal(kx, (1000, IN), dtype=jnp.float32)
    ob = linear_where(xb, w, b)
    jax.block_until_ready(ob)
    yb = xb @ w + b
    eb = jnp.where(yb > 0, yb, yb * 0.25)
    assert ob.shape == yb.shape
    assert jnp.allclose(ob, eb, atol=1e-5, rtol=1e-5)

    print("KERNEL_OK")
</pallas_src>

<mosaic_0001>
module attributes {stable_mosaic.version = 11 : i64} {
  func.func @_linear_leaky_kernel(%arg0: i32, %arg1: memref<8xf32, #tpu.memory_space<smem>>, %arg2: memref<4xf32, #tpu.memory_space<smem>>, %arg3: memref<1x2xf32, #tpu.memory_space<vmem>>, %arg4: memref<1x4xf32, #tpu.memory_space<vmem>>) attributes {dimension_semantics = [#tpu.dimension_semantics<parallel>], iteration_bounds = array<i64: 1>, scalar_prefetch = 2 : i64, scratch_operands = 0 : i64, tpu.core_type = #tpu.core_type<tc>, window_params = [{transform_indices = @transform_0, window_bounds = array<i64: 1, 2>}, {transform_indices = @transform_1, window_bounds = array<i64: 1, 4>}]} {
    %c0 = arith.constant 0 : index
    %c0_0 = arith.constant 0 : index
    %0 = vector.load %arg3[%c0, %c0_0] : memref<1x2xf32, #tpu.memory_space<vmem>>, vector<1x2xf32>
    %1 = vector.extract_strided_slice %0 {offsets = [0, 0], sizes = [1, 1], strides = [1, 1]} : vector<1x2xf32> to vector<1x1xf32>
    %c0_1 = arith.constant 0 : index
    %2 = memref.load %arg1[%c0_1] : memref<8xf32, #tpu.memory_space<smem>>
    %3 = vector.broadcast %2 : f32 to vector<1x1xf32>
    %4 = arith.mulf %1, %3 : vector<1x1xf32>
    %5 = vector.extract_strided_slice %0 {offsets = [0, 1], sizes = [1, 1], strides = [1, 1]} : vector<1x2xf32> to vector<1x1xf32>
    %c4 = arith.constant 4 : index
    %6 = memref.load %arg1[%c4] : memref<8xf32, #tpu.memory_space<smem>>
    %7 = vector.broadcast %6 : f32 to vector<1x1xf32>
    %8 = arith.mulf %5, %7 : vector<1x1xf32>
    %9 = arith.addf %4, %8 : vector<1x1xf32>
    %c0_2 = arith.constant 0 : index
    %10 = memref.load %arg2[%c0_2] : memref<4xf32, #tpu.memory_space<smem>>
    %11 = vector.broadcast %10 : f32 to vector<1x1xf32>
    %12 = arith.addf %9, %11 : vector<1x1xf32>
    %cst = arith.constant 0.000000e+00 : f32
    %13 = vector.broadcast %cst : f32 to vector<1x1xf32>
    %14 = arith.cmpf ogt, %12, %13 : vector<1x1xf32>
    %cst_3 = arith.constant 2.500000e-01 : f32
    %15 = vector.broadcast %cst_3 : f32 to vector<1x1xf32>
    %16 = arith.mulf %12, %15 : vector<1x1xf32>
    %17 = arith.select %14, %12, %16 : vector<1x1xi1>, vector<1x1xf32>
    %c0_4 = arith.constant 0 : index
    %c0_5 = arith.constant 0 : index
    %18 = vector.load %arg4[%c0_4, %c0_5] : memref<1x4xf32, #tpu.memory_space<vmem>>, vector<1x1xf32>
    tpu.vector_store %arg4[%c0_4, %c0_5], %17 {strides = array<i32>} : memref<1x4xf32, #tpu.memory_space<vmem>>, vector<1x1xf32>,
    %19 = vector.extract_strided_slice %0 {offsets = [0, 0], sizes = [1, 1], strides = [1, 1]} : vector<1x2xf32> to vector<1x1xf32>
    %c1 = arith.constant 1 : index
    %20 = memref.load %arg1[%c1] : memref<8xf32, #tpu.memory_space<smem>>
    %21 = vector.broadcast %20 : f32 to vector<1x1xf32>
    %22 = arith.mulf %19, %21 : vector<1x1xf32>
    %23 = vector.extract_strided_slice %0 {offsets = [0, 1], sizes = [1, 1], strides = [1, 1]} : vector<1x2xf32> to vector<1x1xf32>
    %c5 = arith.constant 5 : index
    %24 = memref.load %arg1[%c5] : memref<8xf32, #tpu.memory_space<smem>>
    %25 = vector.broadcast %24 : f32 to vector<1x1xf32>
    %26 = arith.mulf %23, %25 : vector<1x1xf32>
    %27 = arith.addf %22, %26 : vector<1x1xf32>
    %c1_6 = arith.constant 1 : index
    %28 = memref.load %arg2[%c1_6] : memref<4xf32, #tpu.memory_space<smem>>
    %29 = vector.broadcast %28 : f32 to vector<1x1xf32>
    %30 = arith.addf %27, %29 : vector<1x1xf32>
    %cst_7 = arith.constant 0.000000e+00 : f32
    %31 = vector.broadcast %cst_7 : f32 to vector<1x1xf32>
    %32 = arith.cmpf ogt, %30, %31 : vector<1x1xf32>
    %cst_8 = arith.constant 2.500000e-01 : f32
    %33 = vector.broadcast %cst_8 : f32 to vector<1x1xf32>
    %34 = arith.mulf %30, %33 : vector<1x1xf32>
    %35 = arith.select %32, %30, %34 : vector<1x1xi1>, vector<1x1xf32>
    %c0_9 = arith.constant 0 : index
    %c1_10 = arith.constant 1 : index
    %36 = vector.load %arg4[%c0_9, %c1_10] : memref<1x4xf32, #tpu.memory_space<vmem>>, vector<1x1xf32>
    tpu.vector_store %arg4[%c0_9, %c1_10], %35 {strides = array<i32>} : memref<1x4xf32, #tpu.memory_space<vmem>>, vector<1x1xf32>,
    %37 = vector.extract_strided_slice %0 {offsets = [0, 0], sizes = [1, 1], strides = [1, 1]} : vector<1x2xf32> to vector<1x1xf32>
    %c2 = arith.constant 2 : index
    %38 = memref.load %arg1[%c2] : memref<8xf32, #tpu.memory_space<smem>>
    %39 = vector.broadcast %38 : f32 to vector<1x1xf32>
    %40 = arith.mulf %37, %39 : vector<1x1xf32>
    %41 = vector.extract_strided_slice %0 {offsets = [0, 1], sizes = [1, 1], strides = [1, 1]} : vector<1x2xf32> to vector<1x1xf32>
    %c6 = arith.constant 6 : index
    %42 = memref.load %arg1[%c6] : memref<8xf32, #tpu.memory_space<smem>>
    %43 = vector.broadcast %42 : f32 to vector<1x1xf32>
    %44 = arith.mulf %41, %43 : vector<1x1xf32>
    %45 = arith.addf %40, %44 : vector<1x1xf32>
    %c2_11 = arith.constant 2 : index
    %46 = memref.load %arg2[%c2_11] : memref<4xf32, #tpu.memory_space<smem>>
    %47 = vector.broadcast %46 : f32 to vector<1x1xf32>
    %48 = arith.addf %45, %47 : vector<1x1xf32>
    %cst_12 = arith.constant 0.000000e+00 : f32
    %49 = vector.broadcast %cst_12 : f32 to vector<1x1xf32>
    %50 = arith.cmpf ogt, %48, %49 : vector<1x1xf32>
    %cst_13 = arith.constant 2.500000e-01 : f32
    %51 = vector.broadcast %cst_13 : f32 to vector<1x1xf32>
    %52 = arith.mulf %48, %51 : vector<1x1xf32>
    %53 = arith.select %50, %48, %52 : vector<1x1xi1>, vector<1x1xf32>
    %c0_14 = arith.constant 0 : index
    %c2_15 = arith.constant 2 : index
    %54 = vector.load %arg4[%c0_14, %c2_15] : memref<1x4xf32, #tpu.memory_space<vmem>>, vector<1x1xf32>
    tpu.vector_store %arg4[%c0_14, %c2_15], %53 {strides = array<i32>} : memref<1x4xf32, #tpu.memory_space<vmem>>, vector<1x1xf32>,
    %55 = vector.extract_strided_slice %0 {offsets = [0, 0], sizes = [1, 1], strides = [1, 1]} : vector<1x2xf32> to vector<1x1xf32>
    %c3 = arith.constant 3 : index
    %56 = memref.load %arg1[%c3] : memref<8xf32, #tpu.memory_space<smem>>
    %57 = vector.broadcast %56 : f32 to vector<1x1xf32>
    %58 = arith.mulf %55, %57 : vector<1x1xf32>
    %59 = vector.extract_strided_slice %0 {offsets = [0, 1], sizes = [1, 1], strides = [1, 1]} : vector<1x2xf32> to vector<1x1xf32>
    %c7 = arith.constant 7 : index
    %60 = memref.load %arg1[%c7] : memref<8xf32, #tpu.memory_space<smem>>
    %61 = vector.broadcast %60 : f32 to vector<1x1xf32>
    %62 = arith.mulf %59, %61 : vector<1x1xf32>
    %63 = arith.addf %58, %62 : vector<1x1xf32>
    %c3_16 = arith.constant 3 : index
    %64 = memref.load %arg2[%c3_16] : memref<4xf32, #tpu.memory_space<smem>>
    %65 = vector.broadcast %64 : f32 to vector<1x1xf32>
    %66 = arith.addf %63, %65 : vector<1x1xf32>
    %cst_17 = arith.constant 0.000000e+00 : f32
    %67 = vector.broadcast %cst_17 : f32 to vector<1x1xf32>
    %68 = arith.cmpf ogt, %66, %67 : vector<1x1xf32>
    %cst_18 = arith.constant 2.500000e-01 : f32
    %69 = vector.broadcast %cst_18 : f32 to vector<1x1xf32>
    %70 = arith.mulf %66, %69 : vector<1x1xf32>
    %71 = arith.select %68, %66, %70 : vector<1x1xi1>, vector<1x1xf32>
    %c0_19 = arith.constant 0 : index
    %c3_20 = arith.constant 3 : index
    %72 = vector.load %arg4[%c0_19, %c3_20] : memref<1x4xf32, #tpu.memory_space<vmem>>, vector<1x1xf32>
    tpu.vector_store %arg4[%c0_19, %c3_20], %71 {strides = array<i32>} : memref<1x4xf32, #tpu.memory_space<vmem>>, vector<1x1xf32>,
    return
  }
  func.func @transform_0(%arg0: i32, %arg1: memref<8xf32, #tpu.memory_space<smem>>, %arg2: memref<4xf32, #tpu.memory_space<smem>>) -> (i32, i32) {
    %c0_i32 = arith.constant 0 : i32
    %c0_i32_0 = arith.constant 0 : i32
    return %arg0, %c0_i32 : i32, i32
  }
  func.func @transform_1(%arg0: i32, %arg1: memref<8xf32, #tpu.memory_space<smem>>, %arg2: memref<4xf32, #tpu.memory_space<smem>>) -> (i32, i32) {
    %c0_i32 = arith.constant 0 : i32
    %c0_i32_0 = arith.constant 0 : i32
    return %arg0, %c0_i32 : i32, i32
  }
}

</mosaic_0001>

<llo_original>
// kernel: tpu_custom_call.1
$region0: #{tpu_custom_call.1}
  #allocation0 [shape = 'u32[]', space=smem, size = 0x4, offset = 0x4, fixed_abs, tag = 'smem constant byte address 0x4 - core index']
  #allocation1 [shape = 'u32[72,128]{1,0:T(1,128)}', space=vmem, size = 0x9000, scoped, tag = 'internal scratch']
  #allocation2 [shape = 's32[1]{0}', space=sflag, size = 0x4, scoped, tag = 'scoped memory for tpu_custom_call.1']
  #allocation3 [shape = 'u8[512]{0}', space=smem, size = 0x200, scoped, tag = 'prefetched SMEM operand 0']
  #allocation4 [shape = 'u8[512]{0}', space=smem, size = 0x200, scoped, tag = 'prefetched SMEM operand 1']
  %s0 = inlined_call_operand.hbm [shape: f32[8], index: 0, kind: input, shape index: {}]
  %s1 = inlined_call_operand.hbm [shape: f32[4], index: 1, kind: input, shape index: {}]
  %s2 = inlined_call_operand.vmem [shape: f32[1,2], index: 2, kind: input, shape index: {}]
  %s3 = inlined_call_operand.hbm [shape: f32[1,4], index: 3, kind: output, shape index: {}]
  %s4 = sld [smem:[#allocation0]]
  $region14: #{tpu_custom_call.1} parent=0
    _
  %s6 = ssub.s32 1, %s4
  %s7 = scalar_select 0, %s6, %s4
  %s9 = sshll.u32 %s0, 4
  %s10 = int_to_ptr.hbm [resolvable:$true] %s9
  %12 = dma.hbm_to_smem %s10, 16, [#allocation3], [#allocation2]
  %s14 = sshll.u32 %s1, 4
  %s15 = int_to_ptr.hbm [resolvable:$true] %s14
  %17 = dma.hbm_to_smem %s15, 16, [#allocation4], [#allocation2]
  %19 = dma.done [#allocation2], 32
  %20 = sfence
  $region1: #{tpu_custom_call.1} parent=0
    #allocation5 [shape = 'u8[512]{0}', space=vmem, size = 0x400, scoped, tag = 'output window, operand 0, single buffered']
    #allocation6 [shape = 's32[1]{0}', space=sflag, size = 0x4, scoped, tag = 'scoped memory for tpu_custom_call.1']
    %21 = vsyncpa [#allocation6], 0
    // Predicated region
    $region2: #{tpu_custom_call.1} parent=1 // pred_check
      _
    $region3: #{tpu_custom_call.1} parent=1 // pred_check_branch
      %23 = sbr.rel (0) target = $region5
    $region4: #{tpu_custom_call.1} parent=1 // pred_region
      _
    $region5: #{tpu_custom_call.1} parent=1 // pred_fallthru
      _
    %v24 = vld [vmem:[%s2] sm:$0x1]
    %s25 = sld [smem:[#allocation3]]
    %v26 = vstv %s25
    %v27 = vmul.f32 %v24, %v26
    %s28 = sld [smem:[#allocation3 + $0x4]]
    %v29 = vstv %s28
    %v30 = vmul.f32 %v24, %v29
    %32 = vrot.lane.b32.xlu0 %v30, 127
    %v33 = vpop.permute.xlu0 %32
    %v35 = vadd.f32 %v27, %v33
    %s36 = sld [smem:[#allocation4]]
    %v37 = vstv %s36
    %v38 = vadd.f32 %v35, %v37
    %vm39 = vcmp.gt.f32.partialorder %v38, 0.0
    %v40 = vmul.f32 %v38, 0.25
    %v41 = vsel %vm39, %v38, %v40
    %vm42 = vcmask 0
    %43 = vst.msk [vmem:[#allocation5] sm:$0x1] %vm42, %v41
    %s44 = sld [smem:[#allocation3 + $0x1]]
    %v45 = vstv %s44
    %v46 = vmul.f32 %v24, %v45
    %s47 = sld [smem:[#allocation3 + $0x5]]
    %v48 = vstv %s47
    %v49 = vmul.f32 %v24, %v48
    %51 = vrot.lane.b32.xlu0 %v49, 127
    %v52 = vpop.permute.xlu0 %51
    %v54 = vadd.f32 %v46, %v52
    %s55 = sld [smem:[#allocation4 + $0x1]]
    %v56 = vstv %s55
    %v57 = vadd.f32 %v54, %v56
    %vm58 = vcmp.gt.f32.partialorder %v57, 0.0
    %v59 = vmul.f32 %v57, 0.25
    %v60 = vsel %vm58, %v57, %v59
    %v62 = vperm.slane %v60, 0
    %63 = vrot.lane.b32.xlu0 %v62, 1
    %v64 = vpop.permute.xlu0 %63
    %vm66 = vcmask 8200
    %67 = vst.msk [vmem:[#allocation5] sm:$0x1] %vm66, %v64
    %s68 = sld [smem:[#allocation3 + $0x2]]
    %v69 = vstv %s68
    %v70 = vmul.f32 %v24, %v69
    %s71 = sld [smem:[#allocation3 + $0x6]]
    %v72 = vstv %s71
    %v73 = vmul.f32 %v24, %v72
    %75 = vrot.lane.b32.xlu0 %v73, 127
    %v76 = vpop.permute.xlu0 %75
    %v78 = vadd.f32 %v70, %v76
    %s79 = sld [smem:[#allocation4 + $0x2]]
    %v80 = vstv %s79
    %v81 = vadd.f32 %v78, %v80
    %vm82 = vcmp.gt.f32.partialorder %v81, 0.0
    %v83 = vmul.f32 %v81, 0.25
    %v84 = vsel %vm82, %v81, %v83
    %v86 = vperm.slane %v84, 0
    %87 = vrot.lane.b32.xlu0 %v86, 2
    %v88 = vpop.permute.xlu0 %87
    %vm90 = vcmask 16400
    %91 = vst.msk [vmem:[#allocation5] sm:$0x1] %vm90, %v88
    %s92 = sld [smem:[#allocation3 + $0x3]]
    %v93 = vstv %s92
    %v94 = vmul.f32 %v24, %v93
    %s95 = sld [smem:[#allocation3 + $0x7]]
    %v96 = vstv %s95
    %v97 = vmul.f32 %v24, %v96
    %99 = vrot.lane.b32.xlu0 %v97, 127
    %v100 = vpop.permute.xlu0 %99
    %v102 = vadd.f32 %v94, %v100
    %s103 = sld [smem:[#allocation4 + $0x3]]
    %v104 = vstv %s103
    %v105 = vadd.f32 %v102, %v104
    %vm106 = vcmp.gt.f32.partialorder %v105, 0.0
    %v107 = vmul.f32 %v105, 0.25
    %v108 = vsel %vm106, %v105, %v107
    %v110 = vperm.slane %v108, 0
    %111 = vrot.lane.b32.xlu0 %v110, 3
    %v112 = vpop.permute.xlu0 %111
    %vm114 = vcmask 24600
    %115 = vst.msk [vmem:[#allocation5] sm:$0x1] %vm114, %v112
    // Predicated region
    $region6: #{tpu_custom_call.1} parent=1 // pred_check
      _
    $region7: #{tpu_custom_call.1} parent=1 // pred_check_branch
      %117 = sbr.rel (0) target = $region9
    $region8: #{tpu_custom_call.1} parent=1 // pred_region
      %119 = vsyncadd [#allocation6], 0
      %s121 = sshll.u32 [#allocation5], 4
      %s122 = int_to_ptr.vmem [resolvable:$true] %s121
      %s123 = sshll.u32 %s3, 4
      %s124 = int_to_ptr.hbm [resolvable:$true] %s123
      %126 = dma.vmem_to_hbm [thread:$0]  %s122, 16, %s124, [#allocation6]
    $region9: #{tpu_custom_call.1} parent=1 // pred_fallthru
      _
    // Predicated region
    $region10: #{tpu_custom_call.1} parent=1 // pred_check
      _
    $region11: #{tpu_custom_call.1} parent=1 // pred_check_branch
      %128 = sbr.rel (0) target = $region13
    $region12: #{tpu_custom_call.1} parent=1 // pred_region
      %130 = dma.done [#allocation6], 16
    $region13: #{tpu_custom_call.1} parent=1 // pred_fallthru
      _
    %131 = vsyncpa [#allocation6], 1

</llo_original>
